<compile_context>
chip_gen: v6e
topology: v6e:2x2x1
jax: 0.10.0
libtpu: 0.0.40
codegen_flags: <defaults>
</compile_context>

<pallas_src>
import functools
import math

import jax
import jax.numpy as jnp
from jax.experimental import pallas as pl
from jax.experimental.pallas import tpu as pltpu

_LOG_2PI = math.log(2.0 * math.pi)

_TARGET_TILE_BYTES = 6 << 20   # physical (lane-padded) bytes per input tile
_MAX_TILE_ROWS = 8192          # keeps the per-tile output relayout (XLU) tiny
_MIN_SPLIT_BYTES = 2 << 20     # arrays smaller than this run as a single tile
_VMEM_LIMIT_BYTES = 32 << 20   # headroom for 2 x 6 MiB double-buffered input


def _round_up(x, m):
    return -(-x // m) * m


def _pick_rows_tile(n_rows, phys_row_bytes):
    """Rows per tile: whole array when small; otherwise a multiple of 128 sized
    so one lane-padded tile is ~_TARGET_TILE_BYTES and the grid has >= 4 steps
    (DMA/compute overlap + megacore sharding on v7x)."""
    if n_rows * phys_row_bytes <= _MIN_SPLIT_BYTES or n_rows <= 128:
        return n_rows                      # single full-array tile
    cap = max(128, min(_MAX_TILE_ROWS,
                       (_TARGET_TILE_BYTES // phys_row_bytes) // 128 * 128))
    want = max(128, (n_rows // 4) // 128 * 128)   # aim for >= 4 grid steps
    return min(cap, want)


def _make_row_kernel(seg_len, k):
    """Full-L kernel. z_ref: (tb, k*seg_len) packed rows; out_ref: (k, tb)."""
    const = -0.5 * seg_len * _LOG_2PI

    def kernel(z_ref, out_ref):
        z = z_ref[...].astype(jnp.float32)           # native-dtype stream, upcast here
        cols = []
        for m in range(k):                           # exact-f32 segmented sums
            zm = z[:, m * seg_len:(m + 1) * seg_len]
            cols.append(jnp.sum(zm * zm, axis=-1, keepdims=True))   # (tb, 1)
        ssq = cols[0] if k == 1 else jnp.concatenate(cols, axis=-1)  # (tb, k)
        logp = jnp.float32(const) - jnp.float32(0.5) * ssq
        out_ref[...] = jnp.transpose(logp)           # (k, tb): lane-dense stores

    return kernel


def _make_ltiled_kernel(l_total, lane_tile, mask_tail):
    """L-tiled kernel: grid axis 1 walks the lane dim; ssq accumulates in VMEM."""
    const = -0.5 * l_total * _LOG_2PI

    def kernel(z_ref, out_ref, acc_ref):
        li = pl.program_id(1)

        @pl.when(li == 0)
        def _():
            acc_ref[...] = jnp.zeros_like(acc_ref)

        z = z_ref[...].astype(jnp.float32)
        if mask_tail:  # zero lanes past L in the ragged edge lane-block
            lane = jax.lax.broadcasted_iota(jnp.int32, z.shape, 1) + li * lane_tile
            z = jnp.where(lane < l_total, z, jnp.float32(0.0))
        acc_ref[...] += jnp.sum(z * z, axis=-1, keepdims=True)

        @pl.when(li == pl.num_programs(1) - 1)
        def _():
            logp = jnp.float32(const) - jnp.float32(0.5) * acc_ref[...]
            out_ref[...] = jnp.transpose(logp)       # (1, tb) lane-dense

    return kernel


def _run_full_l(zk, l_total, k, rows_per_tile):
    bk, kl = zk.shape                                # kl == k * l_total
    phys_row_bytes = _round_up(kl, 128) * jnp.dtype(zk.dtype).itemsize
    tb = rows_per_tile if rows_per_tile is not None else _pick_rows_tile(bk, phys_row_bytes)
    tb = min(tb, bk)
    assert tb == bk or tb % 128 == 0, "rows_per_tile must be a multiple of 128 (or >= rows)"

    out = pl.pallas_call(
        _make_row_kernel(l_total, k),
        out_shape=jax.ShapeDtypeStruct((k, bk), jnp.float32),
        grid=(pl.cdiv(bk, tb),),                     # ragged edge block masked; no pad
        in_specs=[pl.BlockSpec((tb, kl), lambda i: (i, 0))],
        out_specs=pl.BlockSpec((k, tb), lambda i: (0, i)),
        compiler_params=pltpu.CompilerParams(
            dimension_semantics=("parallel",),
            vmem_limit_bytes=_VMEM_LIMIT_BYTES,
        ),
    )(zk)
    if k == 1:
        return out[0]
    # out[m, r] is the log-prob of original row r*k + m.
    return jnp.transpose(out).reshape(bk * k)


def _run_l_tiled(z, rows_per_tile, lane_tile):
    b, l = z.shape
    itemsize = jnp.dtype(z.dtype).itemsize
    if lane_tile is None:
        lane_tile = max(128, (_TARGET_TILE_BYTES // (128 * itemsize)) // 128 * 128)
    lane_tile = min(lane_tile, _round_up(l, 128))
    assert lane_tile % 128 == 0

    phys_row_bytes = lane_tile * itemsize
    tb = rows_per_tile if rows_per_tile is not None else _pick_rows_tile(b, phys_row_bytes)
    tb = min(tb, b)
    assert tb == b or tb % 128 == 0, "rows_per_tile must be a multiple of 128 (or >= B)"
    mask_tail = (l % lane_tile) != 0

    out = pl.pallas_call(
        _make_ltiled_kernel(l, lane_tile, mask_tail),
        out_shape=jax.ShapeDtypeStruct((1, b), jnp.float32),
        grid=(pl.cdiv(b, tb), pl.cdiv(l, lane_tile)),
        in_specs=[pl.BlockSpec((tb, lane_tile), lambda i, j: (i, j))],
        out_specs=pl.BlockSpec((1, tb), lambda i, j: (0, i)),
        scratch_shapes=[pltpu.VMEM((tb, 1), jnp.float32)],
        compiler_params=pltpu.CompilerParams(
            dimension_semantics=("parallel", "arbitrary"),
            vmem_limit_bytes=_VMEM_LIMIT_BYTES,
        ),
    )(z)
    return out[0]


@functools.partial(jax.jit, static_argnames=("rows_per_tile", "lane_tile"))
def prior_log_p(z, *, rows_per_tile=None, lane_tile=None):
    """log N(z; 0, I) summed over the last axis.  z: [B, L] -> [B] (float32)."""
    b, l = z.shape
    itemsize = jnp.dtype(z.dtype).itemsize

    # Small-L packing: k = 128//L rows per 128-lane row via a free reshape.
    k = 1
    if lane_tile is None and l < 128 and 128 % l == 0 and b % (128 // l) == 0:
        k = 128 // l
    if k > 1:
        return _run_full_l(z.reshape(b // k, k * l), l, k, rows_per_tile)

    # Very large L: tile the lane axis so double-buffered blocks fit in VMEM.
    phys_row_bytes = _round_up(l, 128) * itemsize
    if lane_tile is not None or phys_row_bytes * 128 > _TARGET_TILE_BYTES:
        return _run_l_tiled(z, rows_per_tile, lane_tile)

    # Default: one full-L row block per batch tile.
    return _run_full_l(z, l, 1, rows_per_tile)


def prior_log_p_ref(z):
    """Pure-JAX reference (mirrors log_normal_standard)."""
    zf = z.astype(jnp.float32)
    l = z.shape[1]
    return -0.5 * l * jnp.log(2.0 * jnp.pi) - 0.5 * jnp.sum(zf * zf, axis=-1)


def _check(out, z, what):
    ref = prior_log_p_ref(z)
    assert out.shape == ref.shape, (what, out.shape, ref.shape)
    assert out.dtype == jnp.float32, (what, out.dtype)
    assert jnp.allclose(out, ref, rtol=1e-5, atol=1e-3), (what, out, ref)


if __name__ == "__main__":
    key = jax.random.PRNGKey(0)
    ks = jax.random.split(key, 5)

    # 1) Module-sized case (z: [B, L]): packed path (k = 128//32 = 4), 1 tile.
    z1 = jax.random.normal(ks[0], (8, 32), jnp.float32)
    _check(jax.block_until_ready(prior_log_p(z1)), z1, "packed/single-tile")

    # 2) Packed + multi-step grid + ragged edge block (no wrapper pad): Bk=130.
    z2 = jax.random.normal(ks[1], (520, 32), jnp.float32)
    _check(jax.block_until_ready(prior_log_p(z2, rows_per_tile=128)), z2,
           "packed/multi-step/ragged")

    # 3) Unpacked full-L path (L >= 128), multi-step, ragged batch.
    z3 = jax.random.normal(ks[2], (200, 160), jnp.float32)
    _check(jax.block_until_ready(prior_log_p(z3, rows_per_tile=128)), z3,
           "full-L/multi-step/ragged")

    # 4) bf16 streams in its native dtype and is upcast in-kernel.
    z4 = jax.random.normal(ks[3], (16, 32), jnp.float32).astype(jnp.bfloat16)
    _check(jax.block_until_ready(prior_log_p(z4)), z4, "bf16/packed")

    # 5) L-tiled path (forced small lane tile): lane-tail mask + row edge block.
    z5 = jax.random.normal(ks[4], (136, 300), jnp.float32)
    _check(jax.block_until_ready(prior_log_p(z5, rows_per_tile=128, lane_tile=128)),
           z5, "L-tiled/masked-tail")

    print("KERNEL_OK")
</pallas_src>

<mosaic_0001>
module attributes {stable_mosaic.version = 11 : i64} {
  func.func @kernel(%arg0: i32, %arg1: memref<2x128xf32, #tpu.memory_space<vmem>>, %arg2: memref<4x2xf32, #tpu.memory_space<vmem>>) attributes {dimension_semantics = [#tpu.dimension_semantics<parallel>], iteration_bounds = array<i64: 1>, scalar_prefetch = 0 : i64, scratch_operands = 0 : i64, tpu.core_type = #tpu.core_type<tc>, window_params = [{transform_indices = @transform_0, window_bounds = array<i64: 2, 128>}, {transform_indices = @transform_1, window_bounds = array<i64: 4, 2>}]} {
    %c0 = arith.constant 0 : index
    %c0_0 = arith.constant 0 : index
    %0 = vector.load %arg1[%c0, %c0_0] : memref<2x128xf32, #tpu.memory_space<vmem>>, vector<2x128xf32>
    %1 = vector.extract_strided_slice %0 {offsets = [0, 0], sizes = [2, 32], strides = [1, 1]} : vector<2x128xf32> to vector<2x32xf32>
    %2 = arith.mulf %1, %1 : vector<2x32xf32>
    %cst = arith.constant dense<0.000000e+00> : vector<2xf32>
    %3 = vector.multi_reduction <add>, %2, %cst [1] : vector<2x32xf32> to vector<2xf32>
    %4 = vector.shape_cast %3 : vector<2xf32> to vector<2x1xf32>
    %5 = vector.extract_strided_slice %0 {offsets = [0, 32], sizes = [2, 32], strides = [1, 1]} : vector<2x128xf32> to vector<2x32xf32>
    %6 = arith.mulf %5, %5 : vector<2x32xf32>
    %cst_1 = arith.constant dense<0.000000e+00> : vector<2xf32>
    %7 = vector.multi_reduction <add>, %6, %cst_1 [1] : vector<2x32xf32> to vector<2xf32>
    %8 = vector.shape_cast %7 : vector<2xf32> to vector<2x1xf32>
    %9 = vector.extract_strided_slice %0 {offsets = [0, 64], sizes = [2, 32], strides = [1, 1]} : vector<2x128xf32> to vector<2x32xf32>
    %10 = arith.mulf %9, %9 : vector<2x32xf32>
    %cst_2 = arith.constant dense<0.000000e+00> : vector<2xf32>
    %11 = vector.multi_reduction <add>, %10, %cst_2 [1] : vector<2x32xf32> to vector<2xf32>
    %12 = vector.shape_cast %11 : vector<2xf32> to vector<2x1xf32>
    %13 = vector.extract_strided_slice %0 {offsets = [0, 96], sizes = [2, 32], strides = [1, 1]} : vector<2x128xf32> to vector<2x32xf32>
    %14 = arith.mulf %13, %13 : vector<2x32xf32>
    %cst_3 = arith.constant dense<0.000000e+00> : vector<2xf32>
    %15 = vector.multi_reduction <add>, %14, %cst_3 [1] : vector<2x32xf32> to vector<2xf32>
    %16 = vector.shape_cast %15 : vector<2xf32> to vector<2x1xf32>
    %17 = tpu.concatenate %4, %8, %12, %16 in 1 : vector<2x1xf32>, vector<2x1xf32>, vector<2x1xf32>, vector<2x1xf32> -> vector<2x4xf32>
    %cst_4 = arith.constant 5.000000e-01 : f32
    %18 = vector.broadcast %cst_4 : f32 to vector<2x4xf32>
    %19 = arith.mulf %18, %17 : vector<2x4xf32>
    %cst_5 = arith.constant -29.4060326 : f32
    %20 = vector.broadcast %cst_5 : f32 to vector<2x4xf32>
    %21 = arith.subf %20, %19 : vector<2x4xf32>
    %22 = tpu.transpose %21, [1, 0] : vector<2x4xf32> -> vector<4x2xf32>
    %c0_6 = arith.constant 0 : index
    %c0_7 = arith.constant 0 : index
    %23 = vector.load %arg2[%c0_6, %c0_7] : memref<4x2xf32, #tpu.memory_space<vmem>>, vector<4x2xf32>
    tpu.vector_store %arg2[%c0_6, %c0_7], %22 {strides = array<i32>} : memref<4x2xf32, #tpu.memory_space<vmem>>, vector<4x2xf32>,
    return
  }
  func.func @transform_0(%arg0: i32) -> (i32, i32) {
    %c0_i32 = arith.constant 0 : i32
    %c0_i32_0 = arith.constant 0 : i32
    return %arg0, %c0_i32 : i32, i32
  }
  func.func @transform_1(%arg0: i32) -> (i32, i32) {
    %c0_i32 = arith.constant 0 : i32
    %c0_i32_0 = arith.constant 0 : i32
    return %c0_i32, %arg0 : i32, i32
  }
}

</mosaic_0001>

<llo_original>
// kernel: prior_log_p.1
$region0: #{prior_log_p.1}
  #allocation0 [shape = 'u32[]', space=smem, size = 0x4, offset = 0x4, fixed_abs, tag = 'smem constant byte address 0x4 - core index']
  #allocation1 [shape = 'u32[144,128]{1,0:T(1,128)}', space=vmem, size = 0x12000, scoped, tag = 'internal scratch']
  %s0 = inlined_call_operand.vmem [shape: f32[2,128], index: 0, kind: input, shape index: {}]
  %s1 = inlined_call_operand.vmem [shape: f32[4,2], index: 1, kind: output, shape index: {}]
  %s2 = sld [smem:[#allocation0]]
  $region14: #{prior_log_p.1} parent=0
    _
  %s4 = ssub.s32 1, %s2
  %s5 = scalar_select 0, %s4, %s2
  // Predicated region
  $region2: #{prior_log_p.1} parent=0 // pred_check
    _
  $region3: #{prior_log_p.1} parent=0 // pred_check_branch
    %7 = sbr.rel (0) target = $region5
  $region4: #{prior_log_p.1} parent=0 // pred_region
    _
  $region5: #{prior_log_p.1} parent=0 // pred_fallthru
    _
  %v8 = vld [vmem:[%s0] sm:$0x3]
  %v9 = vmul.f32 %v8, %v8
  %vm10 = vcmask 254976
  %v11 = vsel %vm10, %v9, 0.0
  %12 = vadd.xlane.f32.xlu0 %v11
  %v13 = vpop.xlane.xlu0 %12
  %15 = vrot.lane.b32.xlu0 %v9, 96
  %v16 = vpop.permute.xlu0 %15
  %v18 = vsel %vm10, %v16, 0.0
  %19 = vadd.xlane.f32.xlu0 %v18
  %v20 = vpop.xlane.xlu0 %19
  %21 = vrot.lane.b32.xlu0 %v9, 64
  %v22 = vpop.permute.xlu0 %21
  %v24 = vsel %vm10, %v22, 0.0
  %25 = vadd.xlane.f32.xlu0 %v24
  %v26 = vpop.xlane.xlu0 %25
  %27 = vrot.lane.b32.xlu0 %v9, 32
  %v28 = vpop.permute.xlu0 %27
  %v30 = vsel %vm10, %v28, 0.0
  %31 = vadd.xlane.f32.xlu0 %v30
  %v32 = vpop.xlane.xlu0 %31
  %vm33 = vcmask 7168
  %v34 = vsel %vm33, %v13, %v20
  %vm35 = vcmask 15360
  %v36 = vsel %vm35, %v34, %v26
  %vm37 = vcmask 23552
  %v38 = vsel %vm37, %v36, %v32
  %v39 = vmul.f32 %v38, 0.5
  %v40 = vsub.f32 -29.406033, %v39
  %41 = vxpose.xlu0.b32.start [1/16] %v40, 128
  %42 = vxpose.xlu0.b32.cont [2/16] 0.0, 128
  %43 = vxpose.xlu0.b32.cont [3/16] 0.0, 128
  %44 = vxpose.xlu0.b32.cont [4/16] 0.0, 128
  %45 = vxpose.xlu0.b32.cont [5/16] 0.0, 128
  %46 = vxpose.xlu0.b32.cont [6/16] 0.0, 128
  %47 = vxpose.xlu0.b32.cont [7/16] 0.0, 128
  %48 = vxpose.xlu0.b32.cont [8/16] 0.0, 128
  %49 = vxpose.xlu0.b32.cont [9/16] 0.0, 128
  %50 = vxpose.xlu0.b32.cont [10/16] 0.0, 128
  %51 = vxpose.xlu0.b32.cont [11/16] 0.0, 128
  %52 = vxpose.xlu0.b32.cont [12/16] 0.0, 128
  %53 = vxpose.xlu0.b32.cont [13/16] 0.0, 128
  %54 = vxpose.xlu0.b32.cont [14/16] 0.0, 128
  %55 = vxpose.xlu0.b32.cont [15/16] 0.0, 128
  %56 = vxpose.xlu0.b32.end [16/16] 0.0, 128
  %v57 = vpop.trf.xlu0
  %v58 = vpop.trf.xlu0
  %v59 = vpop.trf.xlu0
  %v60 = vpop.trf.xlu0
  %v61 = vpop.trf.xlu0
  %v62 = vpop.trf.xlu0
  %v63 = vpop.trf.xlu0
  %v64 = vpop.trf.xlu0
  %v65 = vpop.trf.xlu0
  %v66 = vpop.trf.xlu0
  %v67 = vpop.trf.xlu0
  %v68 = vpop.trf.xlu0
  %v69 = vpop.trf.xlu0
  %v70 = vpop.trf.xlu0
  %v71 = vpop.trf.xlu0
  %v72 = vpop.trf.xlu0
  %vm73 = vcmask 11264
  %74 = vst.msk [vmem:[%s1] sm:$0xf] %vm73, %v57
  // Predicated region
  $region6: #{prior_log_p.1} parent=0 // pred_check
    _
  $region7: #{prior_log_p.1} parent=0 // pred_check_branch
    %76 = sbr.rel (0) target = $region9
  $region8: #{prior_log_p.1} parent=0 // pred_region
    _
  $region9: #{prior_log_p.1} parent=0 // pred_fallthru
    _
  // Predicated region
  $region10: #{prior_log_p.1} parent=0 // pred_check
    _
  $region11: #{prior_log_p.1} parent=0 // pred_check_branch
    %78 = sbr.rel (0) target = $region13
  $region12: #{prior_log_p.1} parent=0 // pred_region
    _
  $region13: #{prior_log_p.1} parent=0 // pred_fallthru
    _

</llo_original>
